<compile_context>
chip_gen: v7x
topology: tpu7x:2x2x1
jax: 0.10.0
libtpu: 0.0.40
codegen_flags: <defaults>
</compile_context>

<pallas_src>
import functools

import jax
import jax.numpy as jnp
from jax.experimental import pallas as pl
from jax.experimental.pallas import tpu as pltpu


def _round_up(x, m):
    return (x + m - 1) // m * m


def _partconv_kernel(*refs, training):
    if training:
        patches_ref, w_ref, scale_ref, out_ref = refs
    else:
        patches_ref, w_ref, out_ref = refs
    # MXU: (TM, Kp) @ (Kp, Np) -> (TM, Np), f32 accumulation.
    acc = jnp.dot(patches_ref[...], w_ref[...], preferred_element_type=jnp.float32)
    if training:
        # F.dropout(p=0.5): scale is 0.0 (dropped) or 2.0 (= 1/(1-p)) per element.
        acc = acc * scale_ref[...].astype(jnp.float32)
    out_ref[...] = acc.astype(out_ref.dtype)


def _im2col_2x2s2(x):
    # (N, C, H, W) -> (N*H/2*W/2, C*4); patch columns ordered (c, kh, kw).
    n, c, hh, ww = x.shape
    ho, wo = hh // 2, ww // 2
    x = x.reshape(n, c, ho, 2, wo, 2)
    # TODO(synk): this transpose is a full HBM pass; folding the im2col into the
    # kernel (per-tap matmuls on the NCHW layout) would remove it.
    x = jnp.transpose(x, (0, 2, 4, 1, 3, 5))  # (N, Ho, Wo, C, 2, 2)
    return x.reshape(n * ho * wo, c * 4)


def _w_to_mat(w):
    # Conv2d weight (O, C, kH, kW) -> (C*kH*kW, O), rows ordered (c, kh, kw).
    return w.reshape(w.shape[0], -1).T


def _choose_tm(rows, k_pad, n_pad, training, budget_bytes=20 * 1024 * 1024):
    # Double-buffered streams: patches (bf16) + output (f32) [+ dropout scale bf16],
    # plus the double-buffered resident bf16 weight, must fit the VMEM budget.
    weight_bytes = 2 * k_pad * n_pad * 2
    per_row = 2 * (k_pad * 2 + n_pad * 4 + (n_pad * 2 if training else 0))
    tm = max(32, (budget_bytes - weight_bytes) // max(per_row, 1))
    tm = min(1024, tm)
    tm = max(32, (tm // 32) * 32)          # multiple of 32: safe for bf16/f32 tiling
    return min(tm, _round_up(rows, 32))


def part_conv(x, w_up, w_down, w_glob, perm, *, training=False, dropout_key=None,
              compute_dtype=jnp.bfloat16):
    n, c, hh, ww = x.shape
    # PyTorch only asserts H % 2 == 0; we additionally require H % 4 == 0 so the
    # 2x2 stride-2 windows never straddle the upper/lower split.
    assert hh % 4 == 0 and ww % 2 == 0
    cut = hh // 2
    ho_half, wo = cut // 2, ww // 2
    rows = n * ho_half * wo
    k = c * 4
    nc2 = 2 * c

    # Lane/MXU-dense padding of the contraction dim and output-channel dim.
    k_pad = _round_up(k, 128)
    n_pad = _round_up(nc2, 128)
    # TODO(synk): for very large C (resident weight block > ~16 MiB) the output
    # channel dim should also be tiled into the grid.
    tm = _choose_tm(rows, k_pad, n_pad, training)
    rows_pad = _round_up(rows, tm)
    n_row_tiles = rows_pad // tm

    # im2col for the two spatial halves (plain-JAX glue).
    patches = jnp.stack(
        [_im2col_2x2s2(x[:, :, :cut, :]), _im2col_2x2s2(x[:, :, cut:, :])], axis=0
    )  # (2, rows, k)
    patches = jnp.pad(patches, ((0, 0), (0, rows_pad - rows), (0, k_pad - k)))
    patches = patches.astype(compute_dtype)

    wg, wu, wd = _w_to_mat(w_glob), _w_to_mat(w_up), _w_to_mat(w_down)
    # torch.cat((glob, component), dim=1) -> columns [glob | up/down]; channel
    # shuffle outputs[:, perm] == permuting weight columns before the matmul.
    w_upper = jnp.concatenate([wg, wu], axis=1)[:, perm]
    w_lower = jnp.concatenate([wg, wd], axis=1)[:, perm]
    w_stack = jnp.stack([w_upper, w_lower], axis=0)  # (2, k, nc2)
    w_stack = jnp.pad(w_stack, ((0, 0), (0, k_pad - k), (0, n_pad - nc2)))
    w_stack = w_stack.astype(compute_dtype)

    in_specs = [
        pl.BlockSpec((None, tm, k_pad), lambda h, r: (h, r, 0)),
        # Weight block index ignores r -> stays VMEM-resident across the row loop.
        pl.BlockSpec((None, k_pad, n_pad), lambda h, r: (h, 0, 0)),
    ]
    args = [patches, w_stack]

    if training:
        if dropout_key is None:
            dropout_key = jax.random.PRNGKey(0)
        keep = jax.random.bernoulli(dropout_key, 0.5, (2, rows_pad, n_pad))
        scale = (keep.astype(jnp.float32) * 2.0).astype(compute_dtype)  # {0, 2}
        in_specs.append(pl.BlockSpec((None, tm, n_pad), lambda h, r: (h, r, 0)))
        args.append(scale)

    kernel = functools.partial(_partconv_kernel, training=training)
    out = pl.pallas_call(
        kernel,
        out_shape=jax.ShapeDtypeStruct((2, rows_pad, n_pad), jnp.float32),
        grid_spec=pltpu.PrefetchScalarGridSpec(
            num_scalar_prefetch=0,
            grid=(2, n_row_tiles),            # half axis outer -> weight DMA only 2x
            in_specs=in_specs,
            out_specs=pl.BlockSpec((None, tm, n_pad), lambda h, r: (h, r, 0)),
        ),
        compiler_params=pltpu.CompilerParams(
            dimension_semantics=("parallel", "parallel"),
            vmem_limit_bytes=32 * 1024 * 1024,
        ),
    )(*args)

    # Strip padding; (2, rows, 2C) -> (N, 2C, H/2, W/2), upper-half rows first.
    out = out[:, :rows, :nc2].reshape(2, n, ho_half, wo, nc2)
    # TODO(synk): emitting an NHWC-layout output directly from the kernel would
    # remove this transpose (one extra HBM pass) for NCHW consumers.
    out = jnp.transpose(out, (1, 4, 0, 2, 3)).reshape(n, nc2, 2 * ho_half, wo)
    return out


def torch_like_reference(x, w_up, w_down, w_glob, perm):
    """Pure-JAX reference of the PyTorch forward (eval mode, fixed permutation)."""
    conv = lambda a, w: jax.lax.conv_general_dilated(
        a, w, window_strides=(2, 2), padding="VALID",
        dimension_numbers=("NCHW", "OIHW", "NCHW"))
    cut = x.shape[2] // 2
    up = conv(x[:, :, :cut, :], w_up)
    down = conv(x[:, :, cut:, :], w_down)
    glob = conv(x, w_glob)
    component = jnp.concatenate([up, down], axis=2)
    outputs = jnp.concatenate([glob, component], axis=1)
    return outputs[:, perm, :, :]


if __name__ == "__main__":
    key = jax.random.PRNGKey(0)
    kx, ku, kd, kg, kp, kdrop = jax.random.split(key, 6)
    N, C, H, W = 2, 4, 16, 16
    x = jax.random.normal(kx, (N, C, H, W), dtype=jnp.float32)

    # NOTE: the PyTorch __init__ zero-initializes these conv weights (output would
    # be trivially all zeros); deterministic random weights of the same shape
    # (C_out=C, C_in=C, kH=2, kW=2) are used so the compute path is exercised.
    w_up = 0.1 * jax.random.normal(ku, (C, C, 2, 2), dtype=jnp.float32)
    w_down = 0.1 * jax.random.normal(kd, (C, C, 2, 2), dtype=jnp.float32)
    w_glob = 0.1 * jax.random.normal(kg, (C, C, 2, 2), dtype=jnp.float32)

    # TODO(synk): torch.randperm / F.dropout draw from torch's global RNG; here the
    # channel permutation and the dropout mask come from fixed JAX keys.
    perm = jax.random.permutation(kp, 2 * C)

    # Eval-mode correctness check vs. a plain-JAX conv reference (inputs rounded
    # through bf16, matching the kernel's bf16-input / f32-accumulate path).
    out_eval = jax.block_until_ready(
        part_conv(x, w_up, w_down, w_glob, perm, training=False))
    assert out_eval.shape == (N, 2 * C, H // 2, W // 2)
    rb = lambda a: a.astype(jnp.bfloat16).astype(jnp.float32)
    ref = torch_like_reference(rb(x), rb(w_up), rb(w_down), rb(w_glob), perm)
    assert jnp.allclose(out_eval, ref, atol=1e-2, rtol=1e-2), (
        float(jnp.max(jnp.abs(out_eval - ref))))

    # Training mode (matches the PyTorch module default: dropout active).
    out_train = jax.block_until_ready(
        part_conv(x, w_up, w_down, w_glob, perm, training=True, dropout_key=kdrop))
    assert out_train.shape == (N, 2 * C, H // 2, W // 2)
    # Every element is either dropped (exactly 0) or kept and scaled by 2.
    ok = jnp.isclose(out_train, 0.0, atol=1e-6) | jnp.isclose(
        out_train, 2.0 * out_eval, atol=1e-2, rtol=1e-2)
    assert bool(jnp.all(ok))
    kept = float(jnp.mean((jnp.abs(out_train) > 1e-6).astype(jnp.float32)))
    assert 0.3 < kept < 0.7  # keep probability ~ 0.5

    print("KERNEL_OK")
</pallas_src>

<mosaic_0001>
module attributes {stable_mosaic.version = 11 : i64} {
  func.func @_partconv_kernel(%arg0: i32, %arg1: i32, %arg2: memref<1x64x128xbf16, #tpu.memory_space<vmem>>, %arg3: memref<1x128x128xbf16, #tpu.memory_space<vmem>>, %arg4: memref<1x64x128xf32, #tpu.memory_space<vmem>>) attributes {dimension_semantics = [#tpu.dimension_semantics<parallel>, #tpu.dimension_semantics<parallel>], iteration_bounds = array<i64: 2, 1>, scalar_prefetch = 0 : i64, scratch_operands = 0 : i64, tpu.core_type = #tpu.core_type<tc>, window_params = [{transform_indices = @transform_0, window_bounds = array<i64: 1, 64, 128>}, {transform_indices = @transform_1, window_bounds = array<i64: 1, 128, 128>}, {transform_indices = @transform_2, window_bounds = array<i64: 1, 64, 128>}]} {
    %c0 = arith.constant 0 : index
    %c0_0 = arith.constant 0 : index
    %c0_1 = arith.constant 0 : index
    %0 = vector.load %arg2[%c0, %c0_0, %c0_1] : memref<1x64x128xbf16, #tpu.memory_space<vmem>>, vector<1x64x128xbf16>
    %1 = vector.shape_cast %0 : vector<1x64x128xbf16> to vector<64x128xbf16>
    %c0_2 = arith.constant 0 : index
    %c0_3 = arith.constant 0 : index
    %c0_4 = arith.constant 0 : index
    %2 = vector.load %arg3[%c0_2, %c0_3, %c0_4] : memref<1x128x128xbf16, #tpu.memory_space<vmem>>, vector<1x128x128xbf16>
    %3 = vector.shape_cast %2 : vector<1x128x128xbf16> to vector<128x128xbf16>
    %cst = arith.constant dense<0.000000e+00> : vector<64x128xf32>
    %4 = tpu.matmul %1, %3, %cst {dimension_numbers = #tpu.dot_dimension_numbers<[1], [0], [0], [1], [0, 0, 1, 1], [], []>} : vector<64x128xbf16>, vector<128x128xbf16>, vector<64x128xf32> -> vector<64x128xf32>
    %c0_5 = arith.constant 0 : index
    %c0_6 = arith.constant 0 : index
    %c0_7 = arith.constant 0 : index
    %5 = vector.load %arg4[%c0_5, %c0_6, %c0_7] : memref<1x64x128xf32, #tpu.memory_space<vmem>>, vector<1x64x128xf32>
    %6 = vector.shape_cast %5 : vector<1x64x128xf32> to vector<64x128xf32>
    %7 = vector.shape_cast %4 : vector<64x128xf32> to vector<1x64x128xf32>
    tpu.vector_store %arg4[%c0_5, %c0_6, %c0_7], %7 {strides = array<i32>} : memref<1x64x128xf32, #tpu.memory_space<vmem>>, vector<1x64x128xf32>,
    return
  }
  func.func @transform_0(%arg0: i32, %arg1: i32) -> (i32, i32, i32) {
    %c0_i32 = arith.constant 0 : i32
    %c0_i32_0 = arith.constant 0 : i32
    return %arg0, %arg1, %c0_i32 : i32, i32, i32
  }
  func.func @transform_1(%arg0: i32, %arg1: i32) -> (i32, i32, i32) {
    %c0_i32 = arith.constant 0 : i32
    %c0_i32_0 = arith.constant 0 : i32
    %c0_i32_1 = arith.constant 0 : i32
    return %arg0, %c0_i32, %c0_i32_0 : i32, i32, i32
  }
  func.func @transform_2(%arg0: i32, %arg1: i32) -> (i32, i32, i32) {
    %c0_i32 = arith.constant 0 : i32
    %c0_i32_0 = arith.constant 0 : i32
    return %arg0, %arg1, %c0_i32 : i32, i32, i32
  }
}

</mosaic_0001>

<llo_original>
// kernel: tpu_custom_call.1
$region0: #{tpu_custom_call.1}
  #allocation0 [shape = 'u32[]', space=smem, size = 0x4, offset = 0x4, fixed_abs, tag = 'smem constant byte address 0x4 - core index']
  #allocation1 [shape = 'u32[144,128]{1,0:T(1,128)}', space=vmem, size = 0x12000, scoped, tag = 'internal scratch']
  %s0 = inlined_call_operand.hbm [shape: bf16[2,64,128], index: 0, kind: input, shape index: {}]
  %s1 = inlined_call_operand.hbm [shape: bf16[2,128,128], index: 1, kind: input, shape index: {}]
  %s2 = inlined_call_operand.hbm [shape: f32[2,64,128], index: 2, kind: output, shape index: {}]
  %s3 = sld [smem:[#allocation0]]
  $region49: #{tpu_custom_call.1} parent=0
    _
  %s5 = ssub.s32 1, %s3
  %s6 = scalar_select 0, %s5, %s3
  $region1: #{tpu_custom_call.1} parent=0
    #allocation2 [shape = 'u8[32768]{0}', space=vmem, size = 0x8000, scoped, tag = 'input window, operand 0']
    #allocation3 [shape = 's32[2]{0}', space=sflag, size = 0x8, scoped, tag = 'scoped memory for tpu_custom_call.1']
    #allocation4 [shape = 's32[2]{0}', space=sflag, size = 0x8, scoped, tag = 'scoped memory for tpu_custom_call.1']
    #allocation5 [shape = 'u8[65536]{0}', space=vmem, size = 0x10000, scoped, tag = 'input window, operand 1']
    #allocation6 [shape = 's32[2]{0}', space=sflag, size = 0x8, scoped, tag = 'scoped memory for tpu_custom_call.1']
    #allocation7 [shape = 'u8[65536]{0}', space=vmem, size = 0x10000, scoped, tag = 'output window, operand 0']
    %7 = vsyncpa [#allocation3], 0
    %s8 = scalar_lea.sflag [#allocation3], 1
    %9 = vsyncpa %s8, 0
    %10 = vsyncpa [#allocation6], 0
    %s11 = scalar_lea.sflag [#allocation6], 1
    %12 = vsyncpa %s11, 0
    %13 = vsyncpa [#allocation4], 0
    %s14 = scalar_lea.sflag [#allocation4], 1
    %15 = vsyncpa %s14, 0
    loop: start=0, step=1, limit=4
    $region2: #{tpu_custom_call.1} parent=1 // loop_pre_header
      _
    $region3: #{tpu_custom_call.1} parent=1 // loop_header
      %s17 = sphi 0, %s21
      %p18 = scmp.ge.s32.totalorder %s17, 4
      %s24 = sphi 0, %s36
      %s25 = sphi 0, %s32
      %s26 = sphi 0, %s24
      %s27 = sphi 0, %s25
      %s28 = sphi 0, %s26
      %s29 = sphi 0, %s27
      %s41 = sphi 0, %s43
      %s44 = sphi 0, %s41
      %s45 = sphi 0, %s44
      %s61 = sphi 0, %s45
      %s67 = sphi 0, %s69
      %s70 = sphi 0, %s67
      %s71 = sphi 0, %s70
      %s87 = sphi 0, %s71
      %s95 = sphi 0, %s97
      %s98 = sphi 0, %s95
      %s99 = sphi 0, %s98
      %s115 = sphi 0, %s99
    $region4: #{tpu_custom_call.1} parent=1 // loop_header_branch
      %20 = sbr.rel (%p18) target = $region8
    $region5: #{tpu_custom_call.1} parent=1 // loop_body
      %s22 = ssub.s32 %s17, 1
      %s23 = ssub.s32 %s17, 2
      %s30 = sadd.s32 1, %s25
      %p31 = scmp.ge.s32.totalorder %s30, 1
      %s32 = scalar_select %p31, 0, %s30
      %s33 = sadd.s32 1, %s24
      %s34 = scalar_select %p31, %s33, %s24
      %p35 = scmp.ge.s32.totalorder %s34, 2
      %s36 = scalar_select %p35, 0, %s34
      %s37 = ssub.s32 %s24, %s36
      %s38 = ssub.s32 %s25, %s32
      %s39 = sor.u32 %s37, %s38
      %p40 = scmp.eq.s32.totalorder %s39, 0
      %s42 = sadd.s32 %s41, 1
      %s43 = scalar_select %p40, %s41, %s42
      %p46 = pneg %p40
      %p47 = scmp.eq.s32.totalorder %s17, 1
      %p48 = por %p46, %p47
      %p49 = scmp.ne.s32.totalorder %s41, %s44
      %p50 = scmp.eq.s32.totalorder %s17, 0
      %p51 = por %p49, %p50
      %p52 = scmp.ne.s32.totalorder %s41, %s44
      %p53 = scmp.eq.s32.totalorder %s22, 1
      %p54 = por %p52, %p53
      %p55 = scmp.ne.s32.totalorder %s44, %s45
      %p56 = scmp.eq.s32.totalorder %s22, 0
      %p57 = por %p55, %p56
      %p58 = scmp.ne.s32.totalorder %s44, %s45
      %p59 = scmp.eq.s32.totalorder %s23, 1
      %p60 = por %p58, %p59
      %p62 = scmp.ne.s32.totalorder %s45, %s61
      %p63 = scmp.eq.s32.totalorder %s23, 0
      %p64 = por %p62, %p63
      %s65 = ssub.s32 %s24, %s36
      %p66 = scmp.eq.s32.totalorder %s65, 0
      %s68 = sadd.s32 %s67, 1
      %s69 = scalar_select %p66, %s67, %s68
      %p72 = pneg %p66
      %p73 = scmp.eq.s32.totalorder %s17, 1
      %p74 = por %p72, %p73
      %p75 = scmp.ne.s32.totalorder %s67, %s70
      %p76 = scmp.eq.s32.totalorder %s17, 0
      %p77 = por %p75, %p76
      %p78 = scmp.ne.s32.totalorder %s67, %s70
      %p79 = scmp.eq.s32.totalorder %s22, 1
      %p80 = por %p78, %p79
      %p81 = scmp.ne.s32.totalorder %s70, %s71
      %p82 = scmp.eq.s32.totalorder %s22, 0
      %p83 = por %p81, %p82
      %p84 = scmp.ne.s32.totalorder %s70, %s71
      %p85 = scmp.eq.s32.totalorder %s23, 1
      %p86 = por %p84, %p85
      %p88 = scmp.ne.s32.totalorder %s71, %s87
      %p89 = scmp.eq.s32.totalorder %s23, 0
      %p90 = por %p88, %p89
      %s91 = ssub.s32 %s24, %s36
      %s92 = ssub.s32 %s25, %s32
      %s93 = sor.u32 %s91, %s92
      %p94 = scmp.eq.s32.totalorder %s93, 0
      %s96 = sadd.s32 %s95, 1
      %s97 = scalar_select %p94, %s95, %s96
      %p100 = pneg %p94
      %p101 = scmp.eq.s32.totalorder %s17, 1
      %p102 = por %p100, %p101
      %p103 = scmp.ne.s32.totalorder %s95, %s98
      %p104 = scmp.eq.s32.totalorder %s17, 0
      %p105 = por %p103, %p104
      %p106 = scmp.ne.s32.totalorder %s95, %s98
      %p107 = scmp.eq.s32.totalorder %s22, 1
      %p108 = por %p106, %p107
      %p109 = scmp.ne.s32.totalorder %s98, %s99
      %p110 = scmp.eq.s32.totalorder %s22, 0
      %p111 = por %p109, %p110
      %p112 = scmp.ne.s32.totalorder %s98, %s99
      %p113 = scmp.eq.s32.totalorder %s23, 1
      %p114 = por %p112, %p113
      %p116 = scmp.ne.s32.totalorder %s99, %s115
      %p117 = scmp.eq.s32.totalorder %s23, 0
      %p118 = por %p116, %p117
      %p119 = scmp.le.s32.totalorder 1, %s17
      %p120 = scmp.lt.s32.totalorder %s17, 3
      %p121 = pnand %p119, %p120
      %p122 = pneg %p121
      // Predicated region
      $region9: #{tpu_custom_call.1} parent=5 // pred_check
        _
      $region10: #{tpu_custom_call.1} parent=5 // pred_check_branch
        %124 = sbr.rel (%p121) target = $region12
      $region11: #{tpu_custom_call.1} parent=5 // pred_region
        %s125 = ssub.s32 %s17, 1
      $region12: #{tpu_custom_call.1} parent=5 // pred_fallthru
        _
      %p126 = scmp.lt.s32.totalorder %s17, 2
      // Predicated region
      $region13: #{tpu_custom_call.1} parent=5 // pred_check
        %p127 = pneg %p126
      $region14: #{tpu_custom_call.1} parent=5 // pred_check_branch
        %129 = sbr.rel (%p127) target = $region16
      $region15: #{tpu_custom_call.1} parent=5 // pred_region
        // Predicated region
        $region17: #{tpu_custom_call.1} parent=15 // pred_check
          %p130 = pneg %p51
        $region18: #{tpu_custom_call.1} parent=15 // pred_check_branch
          %132 = sbr.rel (%p130) target = $region20
        $region19: #{tpu_custom_call.1} parent=15 // pred_region
          %s133 = sand.u32 %s41, 1
          %s134 = scalar_lea.sflag [#allocation3], %s133
          %s135 = sand.u32 %s41, 1
          %s136 = smul.addr %s135, 32
          %s137 = scalar_lea.vmem [#allocation2], %s136
          %s138 = smul.u32 8, %s25
          %s140 = ssub.s32 512, 512
          %141 = vsyncadd %s134, %s140
          %s142 = smul.addr %s24, 8
          %s143 = sadd.s32 %s138, %s142
          %s144 = smul.addr %s143, 64
          %s145 = scalar_lea.hbm %s0, %s144
          %s146 = sshll.u32 %s137, 4
          %s147 = int_to_ptr.vmem [resolvable:$true] %s146
          %152 = dma.hbm_to_vmem [thread:$0]  %s145, 512, %s147, %s134, 64, 64, 4
        $region20: #{tpu_custom_call.1} parent=15 // pred_fallthru
          _
        // Predicated region
        $region21: #{tpu_custom_call.1} parent=15 // pred_check
          %p153 = pneg %p77
        $region22: #{tpu_custom_call.1} parent=15 // pred_check_branch
          %155 = sbr.rel (%p153) target = $region24
        $region23: #{tpu_custom_call.1} parent=15 // pred_region
          %s156 = sand.u32 %s67, 1
          %s157 = scalar_lea.sflag [#allocation6], %s156
          %s158 = sand.u32 %s67, 1
          %s159 = smul.addr %s158, 64
          %s160 = scalar_lea.vmem [#allocation5], %s159
          %s162 = ssub.s32 1024, 1024
          %163 = vsyncadd %s157, %s162
          %s164 = smul.addr %s24, 16
          %s165 = smul.addr %s164, 64
          %s166 = scalar_lea.hbm %s1, %s165
          %s167 = sshll.u32 %s160, 4
          %s168 = int_to_ptr.vmem [resolvable:$true] %s167
          %173 = dma.hbm_to_vmem [thread:$0]  %s166, 1024, %s168, %s157, 64, 64, 4
        $region24: #{tpu_custom_call.1} parent=15 // pred_fallthru
          _
      $region16: #{tpu_custom_call.1} parent=5 // pred_fallthru
        _
      %p174 = scmp.le.s32.totalorder 1, %s17
      %p175 = scmp.lt.s32.totalorder %s17, 3
      %p176 = pnand %p174, %p175
      %p177 = pneg %p176
      // Predicated region
      $region25: #{tpu_custom_call.1} parent=5 // pred_check
        _
      $region26: #{tpu_custom_call.1} parent=5 // pred_check_branch
        %179 = sbr.rel (%p176) target = $region28
      $region27: #{tpu_custom_call.1} parent=5 // pred_region
        %s180 = ssub.s32 %s17, 1
        %s181 = sand.u32 %s44, 1
        %s182 = scalar_lea.sflag [#allocation3], %s181
        %s183 = sand.u32 %s44, 1
        %s184 = smul.addr %s183, 32
        %s185 = scalar_lea.vmem [#allocation2], %s184
        // Predicated region
        $region29: #{tpu_custom_call.1} parent=27 // pred_check
          %p186 = pneg %p57
        $region30: #{tpu_custom_call.1} parent=27 // pred_check_branch
          %188 = sbr.rel (%p186) target = $region32
        $region31: #{tpu_custom_call.1} parent=27 // pred_region
          %189 = dma.done %s182, 512
        $region32: #{tpu_custom_call.1} parent=27 // pred_fallthru
          _
        %s190 = sand.u32 %s70, 1
        %s191 = scalar_lea.sflag [#allocation6], %s190
        %s192 = sand.u32 %s70, 1
        %s193 = smul.addr %s192, 64
        %s194 = scalar_lea.vmem [#allocation5], %s193
        // Predicated region
        $region33: #{tpu_custom_call.1} parent=27 // pred_check
          %p195 = pneg %p83
        $region34: #{tpu_custom_call.1} parent=27 // pred_check_branch
          %197 = sbr.rel (%p195) target = $region36
        $region35: #{tpu_custom_call.1} parent=27 // pred_region
          %198 = dma.done %s191, 1024
        $region36: #{tpu_custom_call.1} parent=27 // pred_fallthru
          _
        %s199 = sand.u32 %s44, 1
        %s200 = scalar_lea.sflag [#allocation3], %s199
        %s201 = sand.u32 %s44, 1
        %s202 = smul.addr %s201, 32
        %s203 = scalar_lea.vmem [#allocation2], %s202
        %p204 = pneg %p57
        %p205 = pneg %p54
        %s206 = sand.u32 %s70, 1
        %s207 = scalar_lea.sflag [#allocation6], %s206
        %s208 = sand.u32 %s70, 1
        %s209 = smul.addr %s208, 64
        %s210 = scalar_lea.vmem [#allocation5], %s209
        %p211 = pneg %p83
        %p212 = pneg %p80
        %p213 = pneg %p111
        %p214 = pneg %p108
        %s215 = sand.u32 %s98, 1
        %s216 = scalar_lea.sflag [#allocation4], %s215
        %s217 = sand.u32 %s98, 1
        %s218 = smul.addr %s217, 64
        %s219 = scalar_lea.vmem [#allocation7], %s218
        %s220 = smul.u32 8, %s27
        %s221 = smul.u32 8, %s27
        %v223 = vld [vmem:[%s185] sm:$0xf]
        %v224 = vld [vmem:[%s185 + $0x4] sm:$0xf]
        %v225 = vld [vmem:[%s185 + $0x8] sm:$0xf]
        %v226 = vld [vmem:[%s185 + $0xc] sm:$0xf]
        %v227 = vld [vmem:[%s185 + $0x10] sm:$0xf]
        %v228 = vld [vmem:[%s185 + $0x14] sm:$0xf]
        %v229 = vld [vmem:[%s185 + $0x18] sm:$0xf]
        %v230 = vld [vmem:[%s185 + $0x1c] sm:$0xf]
        %v231 = vld [vmem:[%s194] sm:$0xf]
        %v232 = vld [vmem:[%s194 + $0x4] sm:$0xf]
        %v233 = vld [vmem:[%s194 + $0x8] sm:$0xf]
        %v234 = vld [vmem:[%s194 + $0xc] sm:$0xf]
        %v235 = vld [vmem:[%s194 + $0x10] sm:$0xf]
        %v236 = vld [vmem:[%s194 + $0x14] sm:$0xf]
        %v237 = vld [vmem:[%s194 + $0x18] sm:$0xf]
        %v238 = vld [vmem:[%s194 + $0x1c] sm:$0xf]
        %v239 = vld [vmem:[%s194 + $0x20] sm:$0xf]
        %v240 = vld [vmem:[%s194 + $0x24] sm:$0xf]
        %v241 = vld [vmem:[%s194 + $0x28] sm:$0xf]
        %v242 = vld [vmem:[%s194 + $0x2c] sm:$0xf]
        %v243 = vld [vmem:[%s194 + $0x30] sm:$0xf]
        %v244 = vld [vmem:[%s194 + $0x34] sm:$0xf]
        %v245 = vld [vmem:[%s194 + $0x38] sm:$0xf]
        %v246 = vld [vmem:[%s194 + $0x3c] sm:$0xf]
        %v255 = vunpack.c.l.b16 %v223
        %v256 = vunpack.c.l.b16 %v224
        %v257 = vunpack.c.l.b16 %v225
        %v258 = vunpack.c.l.b16 %v226
        %v259 = vunpack.c.l.b16 %v227
        %v260 = vunpack.c.l.b16 %v228
        %v261 = vunpack.c.l.b16 %v229
        %v262 = vunpack.c.l.b16 %v230
        %v263 = vpack.c.b16 %v256, %v255
        %v264 = vpack.c.b16 %v258, %v257
        %v265 = vpack.c.b16 %v260, %v259
        %v266 = vpack.c.b16 %v262, %v261
        %v287 = vunpack.c.l.b16 %v231
        %v288 = vunpack.c.l.b16 %v232
        %v289 = vunpack.c.l.b16 %v233
        %v290 = vunpack.c.l.b16 %v234
        %v291 = vunpack.c.l.b16 %v235
        %v292 = vunpack.c.l.b16 %v236
        %v293 = vunpack.c.l.b16 %v237
        %v294 = vunpack.c.l.b16 %v238
        %v295 = vunpack.c.l.b16 %v239
        %v296 = vunpack.c.l.b16 %v240
        %v297 = vunpack.c.l.b16 %v241
        %v298 = vunpack.c.l.b16 %v242
        %v299 = vunpack.c.l.b16 %v243
        %v300 = vunpack.c.l.b16 %v244
        %v301 = vunpack.c.l.b16 %v245
        %v302 = vunpack.c.l.b16 %v246
        %v303 = vpack.c.b16 %v288, %v287
        %v304 = vpack.c.b16 %v290, %v289
        %v305 = vpack.c.b16 %v292, %v291
        %v306 = vpack.c.b16 %v294, %v293
        %v307 = vpack.c.b16 %v296, %v295
        %v308 = vpack.c.b16 %v298, %v297
        %v309 = vpack.c.b16 %v300, %v299
        %v310 = vpack.c.b16 %v302, %v301
        %319 = vmatprep.subr.bf16.mxu0 0
        %320 = vmatpush1.bf16.msra.mxu0 %v303
        %321 = vmatprep.subr.bf16.mxu0 0
        %322 = vmatpush1.bf16.msra.mxu0 %v304
        %323 = vmatprep.subr.bf16.mxu0 0
        %324 = vmatpush1.bf16.msra.mxu0 %v305
        %325 = vmatprep.subr.bf16.mxu0 0
        %326 = vmatpush1.bf16.msra.mxu0 %v306
        %327 = vmatprep.subr.bf16.mxu0 0
        %328 = vmatpush1.bf16.msra.mxu0 %v307
        %329 = vmatprep.subr.bf16.mxu0 0
        %330 = vmatpush1.bf16.msra.mxu0 %v308
        %331 = vmatprep.subr.bf16.mxu0 0
        %332 = vmatpush1.bf16.msra.mxu0 %v309
        %333 = vmatprep.subr.bf16.mxu0 0
        %334 = vmatpush1.bf16.msra.mxu0 %v310
        %335 = vmatprep.subr.bf16.mxu0 0
        %336 = vmatpush1.bf16.msra.mxu0 0
        %337 = vmatprep.subr.bf16.mxu0 0
        %338 = vmatpush1.bf16.msra.mxu0 0
        %339 = vmatprep.subr.bf16.mxu0 0
        %340 = vmatpush1.bf16.msra.mxu0 0
        %341 = vmatprep.subr.bf16.mxu0 0
        %342 = vmatpush1.bf16.msra.mxu0 0
        %343 = vmatprep.subr.bf16.mxu0 0
        %344 = vmatpush1.bf16.msra.mxu0 0
        %345 = vmatprep.subr.bf16.mxu0 0
        %346 = vmatpush1.bf16.msra.mxu0 0
        %347 = vmatprep.subr.bf16.mxu0 0
        %348 = vmatpush1.bf16.msra.mxu0 0
        %349 = vmatprep.subr.bf16.mxu0 0
        %350 = vmatpush1.bf16.msra.mxu0 0
        %351 = vmatprep.mubr.bf16.mxu0 0
        %352 = vmatmul.mubr.bf16.gmra.mrb[0].mxu0 %v263
        %v353 = vpop.f32.mrb[0].mxu0
        %v354 = vadd.f32 0.0, %v353
        %v355 = vpop.f32.mrb[0].mxu0
        %v356 = vpop.f32.mrb[0].mxu0
        %v357 = vadd.f32 0.0, %v356
        %v358 = vpop.f32.mrb[0].mxu0
        %359 = vmatprep.mubr.bf16.mxu0 0
        %360 = vmatmul.mubr.bf16.gmra.mrb[0].mxu0 %v264
        %v361 = vpop.f32.mrb[0].mxu0
        %v362 = vadd.f32 0.0, %v361
        %v363 = vpop.f32.mrb[0].mxu0
        %v364 = vpop.f32.mrb[0].mxu0
        %v365 = vadd.f32 0.0, %v364
        %v366 = vpop.f32.mrb[0].mxu0
        %367 = vmatprep.mubr.bf16.mxu0 0
        %368 = vmatmul.mubr.bf16.gmra.mrb[0].mxu0 %v265
        %v369 = vpop.f32.mrb[0].mxu0
        %v370 = vadd.f32 0.0, %v369
        %v371 = vpop.f32.mrb[0].mxu0
        %v372 = vpop.f32.mrb[0].mxu0
        %v373 = vadd.f32 0.0, %v372
        %v374 = vpop.f32.mrb[0].mxu0
        %375 = vmatprep.mubr.bf16.mxu0 0
        %376 = vmatmul.mubr.bf16.gmra.mrb[0].mxu0 %v266
        %v377 = vpop.f32.mrb[0].mxu0
        %v378 = vadd.f32 0.0, %v377
        %v379 = vpop.f32.mrb[0].mxu0
        %v380 = vpop.f32.mrb[0].mxu0
        %v381 = vadd.f32 0.0, %v380
        %v382 = vpop.f32.mrb[0].mxu0
        %383 = vdwg.mxu0
        %384 = vst [vmem:[%s219] sm:$0xff] %v354
        %385 = vst [vmem:[%s219 + $0x8] sm:$0xff] %v357
        %386 = vst [vmem:[%s219 + $0x10] sm:$0xff] %v362
        %387 = vst [vmem:[%s219 + $0x18] sm:$0xff] %v365
        %388 = vst [vmem:[%s219 + $0x20] sm:$0xff] %v370
        %389 = vst [vmem:[%s219 + $0x28] sm:$0xff] %v373
        %390 = vst [vmem:[%s219 + $0x30] sm:$0xff] %v378
        %391 = vst [vmem:[%s219 + $0x38] sm:$0xff] %v381
        %s392 = sand.u32 %s98, 1
        %s393 = scalar_lea.sflag [#allocation4], %s392
        %s394 = sand.u32 %s98, 1
        %s395 = smul.addr %s394, 64
        %s396 = scalar_lea.vmem [#allocation7], %s395
        // Predicated region
        $region37: #{tpu_custom_call.1} parent=27 // pred_check
          %p397 = pneg %p108
        $region38: #{tpu_custom_call.1} parent=27 // pred_check_branch
          %399 = sbr.rel (%p397) target = $region40
        $region39: #{tpu_custom_call.1} parent=27 // pred_region
          %s400 = smul.u32 8, %s27
          %s402 = ssub.s32 1024, 1024
          %403 = vsyncadd %s393, %s402
          %s404 = smul.addr %s26, 8
          %s405 = sadd.s32 %s400, %s404
          %s406 = smul.addr %s405, 128
          %s407 = scalar_lea.hbm %s2, %s406
          %s408 = sshll.u32 %s396, 4
          %s409 = int_to_ptr.vmem [resolvable:$true] %s408
          %414 = dma.vmem_to_hbm [thread:$0]  %s409, 1024, %s407, %s393, 128, 128, 8
        $region40: #{tpu_custom_call.1} parent=27 // pred_fallthru
          _
      $region28: #{tpu_custom_call.1} parent=5 // pred_fallthru
        _
      %p415 = scmp.le.s32.totalorder 2, %s17
      // Predicated region
      $region41: #{tpu_custom_call.1} parent=5 // pred_check
        %p416 = pneg %p415
      $region42: #{tpu_custom_call.1} parent=5 // pred_check_branch
        %418 = sbr.rel (%p416) target = $region44
      $region43: #{tpu_custom_call.1} parent=5 // pred_region
        %s419 = ssub.s32 %s17, 2
        // Predicated region
        $region45: #{tpu_custom_call.1} parent=43 // pred_check
          %p420 = pneg %p114
        $region46: #{tpu_custom_call.1} parent=43 // pred_check_branch
          %422 = sbr.rel (%p420) target = $region48
        $region47: #{tpu_custom_call.1} parent=43 // pred_region
          %s423 = sand.u32 %s99, 1
          %s424 = scalar_lea.sflag [#allocation4], %s423
          %s425 = sand.u32 %s99, 1
          %s426 = smul.addr %s425, 64
          %s427 = scalar_lea.vmem [#allocation7], %s426
          %428 = dma.done %s424, 1024
        $region48: #{tpu_custom_call.1} parent=43 // pred_fallthru
          _
      $region44: #{tpu_custom_call.1} parent=5 // pred_fallthru
        _
    $region6: #{tpu_custom_call.1} parent=1 // loop_footer
      %s21 = sadd.s32 1, %s17
    $region7: #{tpu_custom_call.1} parent=1 // loop_footer_branch
      %16 = sbr.rel target = $region3
    $region8: #{tpu_custom_call.1} parent=1 // loop_exit
      _
    %429 = vsyncpa [#allocation3], 1
    %s430 = scalar_lea.sflag [#allocation3], 1
    %431 = vsyncpa %s430, 1
    %432 = vsyncpa [#allocation6], 1
    %s433 = scalar_lea.sflag [#allocation6], 1
    %434 = vsyncpa %s433, 1
    %435 = vsyncpa [#allocation4], 1
    %s436 = scalar_lea.sflag [#allocation4], 1
    %437 = vsyncpa %s436, 1

</llo_original>
